<compile_context>
chip_gen: v7x
topology: tpu7x:2x2x1
jax: 0.10.0
libtpu: 0.0.40
codegen_flags: <defaults>
</compile_context>

<pallas_src>
import functools
import math

import jax
import jax.numpy as jnp
import numpy as np
from jax import lax
from jax.experimental import pallas as pl
from jax.experimental.pallas import tpu as pltpu


# ---------------------------------------------------------------------------
# Kernel: per-pixel cross-entropy with ignore label.
#   logits_ref: (1, C, tile) native dtype
#   labels_ref: (1, 1, tile) i32
#   loss_ref  : (1, 1, tile) f32
# ---------------------------------------------------------------------------
def _ce_kernel(logits_ref, labels_ref, loss_ref, *, ignore_lb, hw, tile):
    x = logits_ref[0].astype(jnp.float32)                 # (C, tile), f32 math
    lbl = labels_ref[0]                                    # (1, tile) i32

    # logsumexp over the channel (sublane) axis.
    m = jnp.max(x, axis=0, keepdims=True)
    lse = jnp.log(jnp.sum(jnp.exp(x - m), axis=0, keepdims=True)) + m

    # Gather logit[label] per pixel via one-hot compare (no gather op).
    cls = lax.broadcasted_iota(jnp.int32, x.shape, 0)      # row index = class id
    picked = jnp.sum(jnp.where(cls == lbl, x, 0.0), axis=0, keepdims=True)

    # Mask ignored pixels and the ragged tail of the last tile (cheap VALU).
    lane = lax.broadcasted_iota(jnp.int32, lbl.shape, 1) + pl.program_id(1) * tile
    valid = (lbl != ignore_lb) & (lane < hw)
    loss_ref[0] = jnp.where(valid, lse - picked, 0.0)


def per_pixel_ce(logits, labels, ignore_lb=255, max_tile=32768):
    """CrossEntropyLoss(ignore_index=ignore_lb, reduction='none').view(-1)."""
    N, C, H, W = logits.shape
    HW = H * W
    P = N * HW

    # Free, contiguous reshapes — no transpose, no upcast, no pad.
    lg = logits.reshape(N, C, HW)
    lb = labels.reshape(N, 1, HW).astype(jnp.int32)

    lane = 128
    itemsize = jnp.dtype(lg.dtype).itemsize
    # Lane-aligned tile, capped by ~8 MiB for the double-buffered logits block
    # (safe under v5e's 16 MiB scoped default and v7x's 64 MiB physical VMEM).
    budget = 8 * 1024 * 1024
    cap = max(lane, (budget // (2 * C * itemsize)) // lane * lane)
    tile = int(min(max_tile, cap, pl.cdiv(HW, lane) * lane))
    n_tiles = pl.cdiv(HW, tile)

    kernel = functools.partial(_ce_kernel, ignore_lb=ignore_lb, hw=HW, tile=tile)
    cost = pl.CostEstimate(
        flops=6 * C * P,
        transcendentals=(C + 1) * P,
        bytes_accessed=P * C * itemsize + P * 4 + P * 4,
    )

    loss = pl.pallas_call(
        kernel,
        grid=(N, n_tiles),
        in_specs=[
            pl.BlockSpec((1, C, tile), lambda n, j: (n, 0, j)),
            pl.BlockSpec((1, 1, tile), lambda n, j: (n, 0, j)),
        ],
        out_specs=pl.BlockSpec((1, 1, tile), lambda n, j: (n, 0, j)),
        out_shape=jax.ShapeDtypeStruct((N, 1, HW), jnp.float32),
        compiler_params=pltpu.CompilerParams(
            dimension_semantics=("parallel", "parallel")),
        cost_estimate=cost,
    )(lg, lb)
    return loss.reshape(P)


def ohem_ce_loss(logits, labels, thresh, n_min, ignore_lb=255):
    """Forward pass of OhemCELoss (weight=None path)."""
    # TODO(synk): optional per-class `weight` argument not implemented
    # (module default weight=None).
    th = float(-math.log(thresh))

    loss = per_pixel_ce(logits, labels, ignore_lb)         # Pallas kernel, (P,)

    # OHEM selection.  torch: sort desc, `loss_sorted[n_min] > thresh` is
    # exactly equivalent to count(loss > thresh) > n_min (strict > both ways),
    # so the expensive top_k only runs in the fallback branch of lax.cond.
    # TODO(synk): per-tile partial sums/counts could be emitted from the
    # kernel to avoid re-reading the (P,) loss vector (~1/(C+1) traffic).
    over = loss > th
    n_over = jnp.sum(over.astype(jnp.int32))
    sum_over = jnp.sum(jnp.where(over, loss, 0.0))

    def _mean_over(_):
        return sum_over / jnp.maximum(n_over.astype(jnp.float32), 1.0)

    def _mean_topk(x):
        # TODO(synk): sort/top-k has no Pallas TPU primitive; lax.top_k here.
        return jnp.mean(lax.top_k(x, n_min)[0])

    return lax.cond(n_over > n_min, _mean_over, _mean_topk, loss)


# ---------------------------------------------------------------------------
# Pure-JAX reference (mirrors the PyTorch module) for correctness checking.
# ---------------------------------------------------------------------------
def _reference_ohem(logits, labels, thresh, n_min, ignore_lb=255):
    C = logits.shape[1]
    logp = jax.nn.log_softmax(logits.astype(jnp.float32), axis=1)
    safe = jnp.clip(labels, 0, C - 1)
    picked = jnp.take_along_axis(logp, safe[:, None, :, :], axis=1)[:, 0]
    loss = jnp.where(labels == ignore_lb, 0.0, -picked).reshape(-1)
    loss_sorted = jnp.sort(loss)[::-1]
    th = -math.log(thresh)
    over = loss_sorted > th
    mean_over = jnp.sum(jnp.where(over, loss_sorted, 0.0)) / jnp.maximum(
        jnp.sum(over.astype(jnp.float32)), 1.0)
    mean_topk = jnp.mean(loss_sorted[:n_min])
    return jnp.where(loss_sorted[n_min] > th, mean_over, mean_topk)


if __name__ == "__main__":
    N, C, H, W = 2, 4, 16, 16
    thresh = 0.7
    n_min = (N * H * W) // 16          # 32
    ignore_lb = 255

    key = jax.random.PRNGKey(0)
    k1, k2, k3 = jax.random.split(key, 3)
    logits = jax.random.normal(k1, (N, C, H, W), dtype=jnp.float32) * 2.0
    labels = jax.random.randint(k2, (N, H, W), 0, C, dtype=jnp.int32)
    ignore_mask = jax.random.bernoulli(k3, 0.1, (N, H, W))
    labels = jnp.where(ignore_mask, ignore_lb, labels)

    out = ohem_ce_loss(logits, labels, thresh, n_min, ignore_lb)
    out = jax.block_until_ready(out)

    ref = _reference_ohem(logits, labels, thresh, n_min, ignore_lb)
    np.testing.assert_allclose(np.asarray(out), np.asarray(ref),
                               rtol=1e-5, atol=1e-5)
    print("KERNEL_OK")
</pallas_src>

<mosaic_0001>
module attributes {stable_mosaic.version = 11 : i64} {
  func.func @_ce_kernel(%arg0: i32, %arg1: i32, %arg2: memref<1x4x256xf32, #tpu.memory_space<vmem>>, %arg3: memref<1x1x256xi32, #tpu.memory_space<vmem>>, %arg4: memref<1x1x256xf32, #tpu.memory_space<vmem>>) attributes {dimension_semantics = [#tpu.dimension_semantics<parallel>, #tpu.dimension_semantics<parallel>], iteration_bounds = array<i64: 2, 1>, scalar_prefetch = 0 : i64, scratch_operands = 0 : i64, tpu.core_type = #tpu.core_type<tc>, window_params = [{transform_indices = @transform_0, window_bounds = array<i64: 1, 4, 256>}, {transform_indices = @transform_1, window_bounds = array<i64: 1, 1, 256>}, {transform_indices = @transform_2, window_bounds = array<i64: 1, 1, 256>}]} {
    %c0 = arith.constant 0 : index
    %c0_0 = arith.constant 0 : index
    %c0_1 = arith.constant 0 : index
    %0 = vector.load %arg2[%c0, %c0_0, %c0_1] : memref<1x4x256xf32, #tpu.memory_space<vmem>>, vector<1x4x256xf32>
    %1 = vector.shape_cast %0 : vector<1x4x256xf32> to vector<4x256xf32>
    %c0_2 = arith.constant 0 : index
    %c0_3 = arith.constant 0 : index
    %c0_4 = arith.constant 0 : index
    %2 = vector.load %arg3[%c0_2, %c0_3, %c0_4] : memref<1x1x256xi32, #tpu.memory_space<vmem>>, vector<1x1x256xi32>
    %3 = vector.shape_cast %2 : vector<1x1x256xi32> to vector<1x256xi32>
    %cst = arith.constant dense<0xFF800000> : vector<256xf32>
    %4 = vector.multi_reduction <maximumf>, %1, %cst [0] : vector<4x256xf32> to vector<256xf32>
    %5 = vector.shape_cast %4 : vector<256xf32> to vector<1x256xf32>
    %6 = vector.broadcast %5 : vector<1x256xf32> to vector<4x256xf32>
    %7 = arith.subf %1, %6 : vector<4x256xf32>
    %8 = math.exp %7 : vector<4x256xf32>
    %cst_5 = arith.constant dense<0.000000e+00> : vector<256xf32>
    %9 = vector.multi_reduction <add>, %8, %cst_5 [0] : vector<4x256xf32> to vector<256xf32>
    %10 = vector.shape_cast %9 : vector<256xf32> to vector<1x256xf32>
    %11 = math.log %10 : vector<1x256xf32>
    %12 = arith.addf %11, %5 : vector<1x256xf32>
    %13 = tpu.iota {dimensions = array<i32: 0>} : vector<4x256xi32>
    %14 = vector.broadcast %3 : vector<1x256xi32> to vector<4x256xi32>
    %15 = arith.cmpi eq, %13, %14 : vector<4x256xi32>
    %cst_6 = arith.constant 0.000000e+00 : f32
    %16 = vector.broadcast %cst_6 : f32 to vector<4x256xf32>
    %17 = arith.select %15, %1, %16 : vector<4x256xi1>, vector<4x256xf32>
    %cst_7 = arith.constant dense<0.000000e+00> : vector<256xf32>
    %18 = vector.multi_reduction <add>, %17, %cst_7 [0] : vector<4x256xf32> to vector<256xf32>
    %19 = vector.shape_cast %18 : vector<256xf32> to vector<1x256xf32>
    %20 = tpu.iota {dimensions = array<i32: 1>} : vector<1x256xi32>
    %c256_i32 = arith.constant 256 : i32
    %21 = arith.muli %arg1, %c256_i32 : i32
    %22 = vector.broadcast %21 : i32 to vector<1x256xi32>
    %23 = arith.addi %20, %22 : vector<1x256xi32>
    %c255_i32 = arith.constant 255 : i32
    %24 = vector.broadcast %c255_i32 : i32 to vector<1x256xi32>
    %25 = arith.cmpi ne, %3, %24 : vector<1x256xi32>
    %c256_i32_8 = arith.constant 256 : i32
    %26 = vector.broadcast %c256_i32_8 : i32 to vector<1x256xi32>
    %27 = arith.cmpi slt, %23, %26 : vector<1x256xi32>
    %28 = arith.andi %25, %27 : vector<1x256xi1>
    %29 = arith.subf %12, %19 : vector<1x256xf32>
    %cst_9 = arith.constant 0.000000e+00 : f32
    %30 = vector.broadcast %cst_9 : f32 to vector<1x256xf32>
    %31 = arith.select %28, %29, %30 : vector<1x256xi1>, vector<1x256xf32>
    %c0_10 = arith.constant 0 : index
    %c0_11 = arith.constant 0 : index
    %c0_12 = arith.constant 0 : index
    %32 = vector.load %arg4[%c0_10, %c0_11, %c0_12] : memref<1x1x256xf32, #tpu.memory_space<vmem>>, vector<1x1x256xf32>
    %33 = vector.shape_cast %32 : vector<1x1x256xf32> to vector<1x256xf32>
    %34 = vector.shape_cast %31 : vector<1x256xf32> to vector<1x1x256xf32>
    tpu.vector_store %arg4[%c0_10, %c0_11, %c0_12], %34 {strides = array<i32>} : memref<1x1x256xf32, #tpu.memory_space<vmem>>, vector<1x1x256xf32>,
    return
  }
  func.func @transform_0(%arg0: i32, %arg1: i32) -> (i32, i32, i32) {
    %c0_i32 = arith.constant 0 : i32
    %c0_i32_0 = arith.constant 0 : i32
    return %arg0, %c0_i32, %arg1 : i32, i32, i32
  }
  func.func @transform_1(%arg0: i32, %arg1: i32) -> (i32, i32, i32) {
    %c0_i32 = arith.constant 0 : i32
    %c0_i32_0 = arith.constant 0 : i32
    return %arg0, %c0_i32, %arg1 : i32, i32, i32
  }
  func.func @transform_2(%arg0: i32, %arg1: i32) -> (i32, i32, i32) {
    %c0_i32 = arith.constant 0 : i32
    %c0_i32_0 = arith.constant 0 : i32
    return %arg0, %c0_i32, %arg1 : i32, i32, i32
  }
}

</mosaic_0001>

<llo_original>
// kernel: tpu_custom_call.1
$region0: #{tpu_custom_call.1}
  #allocation0 [shape = 'u32[]', space=smem, size = 0x4, offset = 0x4, fixed_abs, tag = 'smem constant byte address 0x4 - core index']
  #allocation1 [shape = 'u32[144,128]{1,0:T(1,128)}', space=vmem, size = 0x12000, scoped, tag = 'internal scratch']
  %s0 = inlined_call_operand.hbm [shape: f32[2,4,256], index: 0, kind: input, shape index: {}]
  %s1 = inlined_call_operand.hbm [shape: s32[2,1,256], index: 1, kind: input, shape index: {}]
  %s2 = inlined_call_operand.hbm [shape: f32[2,1,256], index: 2, kind: output, shape index: {}]
  %s3 = sld [smem:[#allocation0]]
  $region49: #{tpu_custom_call.1} parent=0
    _
  %s5 = ssub.s32 1, %s3
  %s6 = scalar_select 0, %s5, %s3
  $region1: #{tpu_custom_call.1} parent=0
    #allocation2 [shape = 'u8[8192]{0}', space=vmem, size = 0x2000, scoped, tag = 'input window, operand 0']
    #allocation3 [shape = 's32[2]{0}', space=sflag, size = 0x8, scoped, tag = 'scoped memory for tpu_custom_call.1']
    #allocation4 [shape = 's32[2]{0}', space=sflag, size = 0x8, scoped, tag = 'scoped memory for tpu_custom_call.1']
    #allocation5 [shape = 'u8[2048]{0}', space=vmem, size = 0x800, scoped, tag = 'input window, operand 1']
    #allocation6 [shape = 's32[2]{0}', space=sflag, size = 0x8, scoped, tag = 'scoped memory for tpu_custom_call.1']
    #allocation7 [shape = 'u8[2048]{0}', space=vmem, size = 0x800, scoped, tag = 'output window, operand 0']
    %7 = vsyncpa [#allocation3], 0
    %s8 = scalar_lea.sflag [#allocation3], 1
    %9 = vsyncpa %s8, 0
    %10 = vsyncpa [#allocation6], 0
    %s11 = scalar_lea.sflag [#allocation6], 1
    %12 = vsyncpa %s11, 0
    %13 = vsyncpa [#allocation4], 0
    %s14 = scalar_lea.sflag [#allocation4], 1
    %15 = vsyncpa %s14, 0
    loop: start=0, step=1, limit=4
    $region2: #{tpu_custom_call.1} parent=1 // loop_pre_header
      _
    $region3: #{tpu_custom_call.1} parent=1 // loop_header
      %s17 = sphi 0, %s21
      %p18 = scmp.ge.s32.totalorder %s17, 4
      %s24 = sphi 0, %s36
      %s25 = sphi 0, %s32
      %s26 = sphi 0, %s24
      %s27 = sphi 0, %s25
      %s28 = sphi 0, %s26
      %s29 = sphi 0, %s27
      %s41 = sphi 0, %s43
      %s44 = sphi 0, %s41
      %s45 = sphi 0, %s44
      %s61 = sphi 0, %s45
      %s69 = sphi 0, %s71
      %s72 = sphi 0, %s69
      %s73 = sphi 0, %s72
      %s89 = sphi 0, %s73
      %s97 = sphi 0, %s99
      %s100 = sphi 0, %s97
      %s101 = sphi 0, %s100
      %s117 = sphi 0, %s101
    $region4: #{tpu_custom_call.1} parent=1 // loop_header_branch
      %20 = sbr.rel (%p18) target = $region8
    $region5: #{tpu_custom_call.1} parent=1 // loop_body
      %s22 = ssub.s32 %s17, 1
      %s23 = ssub.s32 %s17, 2
      %s30 = sadd.s32 1, %s25
      %p31 = scmp.ge.s32.totalorder %s30, 1
      %s32 = scalar_select %p31, 0, %s30
      %s33 = sadd.s32 1, %s24
      %s34 = scalar_select %p31, %s33, %s24
      %p35 = scmp.ge.s32.totalorder %s34, 2
      %s36 = scalar_select %p35, 0, %s34
      %s37 = ssub.s32 %s24, %s36
      %s38 = ssub.s32 %s25, %s32
      %s39 = sor.u32 %s37, %s38
      %p40 = scmp.eq.s32.totalorder %s39, 0
      %s42 = sadd.s32 %s41, 1
      %s43 = scalar_select %p40, %s41, %s42
      %p46 = pneg %p40
      %p47 = scmp.eq.s32.totalorder %s17, 1
      %p48 = por %p46, %p47
      %p49 = scmp.ne.s32.totalorder %s41, %s44
      %p50 = scmp.eq.s32.totalorder %s17, 0
      %p51 = por %p49, %p50
      %p52 = scmp.ne.s32.totalorder %s41, %s44
      %p53 = scmp.eq.s32.totalorder %s22, 1
      %p54 = por %p52, %p53
      %p55 = scmp.ne.s32.totalorder %s44, %s45
      %p56 = scmp.eq.s32.totalorder %s22, 0
      %p57 = por %p55, %p56
      %p58 = scmp.ne.s32.totalorder %s44, %s45
      %p59 = scmp.eq.s32.totalorder %s23, 1
      %p60 = por %p58, %p59
      %p62 = scmp.ne.s32.totalorder %s45, %s61
      %p63 = scmp.eq.s32.totalorder %s23, 0
      %p64 = por %p62, %p63
      %s65 = ssub.s32 %s24, %s36
      %s66 = ssub.s32 %s25, %s32
      %s67 = sor.u32 %s65, %s66
      %p68 = scmp.eq.s32.totalorder %s67, 0
      %s70 = sadd.s32 %s69, 1
      %s71 = scalar_select %p68, %s69, %s70
      %p74 = pneg %p68
      %p75 = scmp.eq.s32.totalorder %s17, 1
      %p76 = por %p74, %p75
      %p77 = scmp.ne.s32.totalorder %s69, %s72
      %p78 = scmp.eq.s32.totalorder %s17, 0
      %p79 = por %p77, %p78
      %p80 = scmp.ne.s32.totalorder %s69, %s72
      %p81 = scmp.eq.s32.totalorder %s22, 1
      %p82 = por %p80, %p81
      %p83 = scmp.ne.s32.totalorder %s72, %s73
      %p84 = scmp.eq.s32.totalorder %s22, 0
      %p85 = por %p83, %p84
      %p86 = scmp.ne.s32.totalorder %s72, %s73
      %p87 = scmp.eq.s32.totalorder %s23, 1
      %p88 = por %p86, %p87
      %p90 = scmp.ne.s32.totalorder %s73, %s89
      %p91 = scmp.eq.s32.totalorder %s23, 0
      %p92 = por %p90, %p91
      %s93 = ssub.s32 %s24, %s36
      %s94 = ssub.s32 %s25, %s32
      %s95 = sor.u32 %s93, %s94
      %p96 = scmp.eq.s32.totalorder %s95, 0
      %s98 = sadd.s32 %s97, 1
      %s99 = scalar_select %p96, %s97, %s98
      %p102 = pneg %p96
      %p103 = scmp.eq.s32.totalorder %s17, 1
      %p104 = por %p102, %p103
      %p105 = scmp.ne.s32.totalorder %s97, %s100
      %p106 = scmp.eq.s32.totalorder %s17, 0
      %p107 = por %p105, %p106
      %p108 = scmp.ne.s32.totalorder %s97, %s100
      %p109 = scmp.eq.s32.totalorder %s22, 1
      %p110 = por %p108, %p109
      %p111 = scmp.ne.s32.totalorder %s100, %s101
      %p112 = scmp.eq.s32.totalorder %s22, 0
      %p113 = por %p111, %p112
      %p114 = scmp.ne.s32.totalorder %s100, %s101
      %p115 = scmp.eq.s32.totalorder %s23, 1
      %p116 = por %p114, %p115
      %p118 = scmp.ne.s32.totalorder %s101, %s117
      %p119 = scmp.eq.s32.totalorder %s23, 0
      %p120 = por %p118, %p119
      %p121 = scmp.le.s32.totalorder 1, %s17
      %p122 = scmp.lt.s32.totalorder %s17, 3
      %p123 = pnand %p121, %p122
      %p124 = pneg %p123
      // Predicated region
      $region9: #{tpu_custom_call.1} parent=5 // pred_check
        _
      $region10: #{tpu_custom_call.1} parent=5 // pred_check_branch
        %126 = sbr.rel (%p123) target = $region12
      $region11: #{tpu_custom_call.1} parent=5 // pred_region
        %s127 = ssub.s32 %s17, 1
      $region12: #{tpu_custom_call.1} parent=5 // pred_fallthru
        _
      %p128 = scmp.lt.s32.totalorder %s17, 2
      // Predicated region
      $region13: #{tpu_custom_call.1} parent=5 // pred_check
        %p129 = pneg %p128
      $region14: #{tpu_custom_call.1} parent=5 // pred_check_branch
        %131 = sbr.rel (%p129) target = $region16
      $region15: #{tpu_custom_call.1} parent=5 // pred_region
        // Predicated region
        $region17: #{tpu_custom_call.1} parent=15 // pred_check
          %p132 = pneg %p51
        $region18: #{tpu_custom_call.1} parent=15 // pred_check_branch
          %134 = sbr.rel (%p132) target = $region20
        $region19: #{tpu_custom_call.1} parent=15 // pred_region
          %s135 = sand.u32 %s41, 1
          %s136 = scalar_lea.sflag [#allocation3], %s135
          %s137 = sand.u32 %s41, 1
          %s138 = smul.addr %s137, 8
          %s139 = scalar_lea.vmem [#allocation2], %s138
          %s140 = smul.u32 2, %s25
          %s142 = ssub.s32 128, 128
          %143 = vsyncadd %s136, %s142
          %s144 = smul.addr %s24, 2
          %s145 = sadd.s32 %s140, %s144
          %s146 = smul.addr %s145, 64
          %s147 = scalar_lea.hbm %s0, %s146
          %s149 = sshll.u32 %s139, 4
          %s150 = int_to_ptr.vmem [resolvable:$true] %s149
          %152 = dma.hbm_to_vmem [thread:$0]  %s147, 128, %s150, %s136
        $region20: #{tpu_custom_call.1} parent=15 // pred_fallthru
          _
        // Predicated region
        $region21: #{tpu_custom_call.1} parent=15 // pred_check
          %p153 = pneg %p79
        $region22: #{tpu_custom_call.1} parent=15 // pred_check_branch
          %155 = sbr.rel (%p153) target = $region24
        $region23: #{tpu_custom_call.1} parent=15 // pred_region
          %s156 = sand.u32 %s69, 1
          %s157 = scalar_lea.sflag [#allocation6], %s156
          %s158 = sand.u32 %s69, 1
          %s159 = smul.addr %s158, 2
          %s160 = scalar_lea.vmem [#allocation5], %s159
          %s161 = smul.u32 2, %s25
          %s163 = ssub.s32 32, 32
          %164 = vsyncadd %s157, %s163
          %s165 = smul.addr %s24, 2
          %s166 = sadd.s32 %s161, %s165
          %s167 = smul.addr %s166, 16
          %s168 = scalar_lea.hbm %s1, %s167
          %s170 = sshll.u32 %s160, 4
          %s171 = int_to_ptr.vmem [resolvable:$true] %s170
          %173 = dma.hbm_to_vmem [thread:$0]  %s168, 32, %s171, %s157
        $region24: #{tpu_custom_call.1} parent=15 // pred_fallthru
          _
      $region16: #{tpu_custom_call.1} parent=5 // pred_fallthru
        _
      %p174 = scmp.le.s32.totalorder 1, %s17
      %p175 = scmp.lt.s32.totalorder %s17, 3
      %p176 = pnand %p174, %p175
      %p177 = pneg %p176
      // Predicated region
      $region25: #{tpu_custom_call.1} parent=5 // pred_check
        _
      $region26: #{tpu_custom_call.1} parent=5 // pred_check_branch
        %179 = sbr.rel (%p176) target = $region28
      $region27: #{tpu_custom_call.1} parent=5 // pred_region
        %s180 = ssub.s32 %s17, 1
        %s181 = sand.u32 %s44, 1
        %s182 = scalar_lea.sflag [#allocation3], %s181
        %s183 = sand.u32 %s44, 1
        %s184 = smul.addr %s183, 8
        %s185 = scalar_lea.vmem [#allocation2], %s184
        // Predicated region
        $region29: #{tpu_custom_call.1} parent=27 // pred_check
          %p186 = pneg %p57
        $region30: #{tpu_custom_call.1} parent=27 // pred_check_branch
          %188 = sbr.rel (%p186) target = $region32
        $region31: #{tpu_custom_call.1} parent=27 // pred_region
          %189 = dma.done %s182, 128
        $region32: #{tpu_custom_call.1} parent=27 // pred_fallthru
          _
        %s190 = sand.u32 %s72, 1
        %s191 = scalar_lea.sflag [#allocation6], %s190
        %s192 = sand.u32 %s72, 1
        %s193 = smul.addr %s192, 2
        %s194 = scalar_lea.vmem [#allocation5], %s193
        // Predicated region
        $region33: #{tpu_custom_call.1} parent=27 // pred_check
          %p195 = pneg %p85
        $region34: #{tpu_custom_call.1} parent=27 // pred_check_branch
          %197 = sbr.rel (%p195) target = $region36
        $region35: #{tpu_custom_call.1} parent=27 // pred_region
          %198 = dma.done %s191, 32
        $region36: #{tpu_custom_call.1} parent=27 // pred_fallthru
          _
        %s199 = sand.u32 %s44, 1
        %s200 = scalar_lea.sflag [#allocation3], %s199
        %s201 = sand.u32 %s44, 1
        %s202 = smul.addr %s201, 8
        %s203 = scalar_lea.vmem [#allocation2], %s202
        %p204 = pneg %p57
        %p205 = pneg %p54
        %s206 = sand.u32 %s72, 1
        %s207 = scalar_lea.sflag [#allocation6], %s206
        %s208 = sand.u32 %s72, 1
        %s209 = smul.addr %s208, 2
        %s210 = scalar_lea.vmem [#allocation5], %s209
        %p211 = pneg %p85
        %p212 = pneg %p82
        %p213 = pneg %p113
        %p214 = pneg %p110
        %s215 = sand.u32 %s100, 1
        %s216 = scalar_lea.sflag [#allocation4], %s215
        %s217 = sand.u32 %s100, 1
        %s218 = smul.addr %s217, 2
        %s219 = scalar_lea.vmem [#allocation7], %s218
        %s220 = smul.u32 2, %s27
        %s221 = smul.u32 2, %s27
        %s222 = smul.u32 2, %s27
        %v223 = vld [vmem:[%s185] sm:$0xff]
        %v224 = vld [vmem:[%s194] sm:$0x3]
        %v226 = vcombine.high %v223, %v223
        %vm228 = vcmask 1043456
        %v229 = vsel %vm228, %v223, -inf
        %v230 = vrot.slane %v229, 4
        %v231 = vmax.f32 %v229, %v230
        %v232 = vrot.slane %v231, 2
        %v233 = vmax.f32 %v231, %v232
        %v234 = vrot.slane %v233, 1
        %v235 = vmax.f32 %v233, %v234
        %v236 = vsel %vm228, %v226, -inf
        %v237 = vrot.slane %v236, 4
        %v238 = vmax.f32 %v236, %v237
        %v239 = vrot.slane %v238, 2
        %v240 = vmax.f32 %v238, %v239
        %v241 = vrot.slane %v240, 1
        %v242 = vmax.f32 %v240, %v241
        %v245 = vcombine.low %v235, %v242
        %v247 = vsub.f32 %v223, %v245
        %v248 = vmul.f32 %v247, 1.442695
        %v249 = vpow.pop %v248
        %v251 = vcombine.high %v249, %v249
        %v253 = vsel %vm228, %v249, 0.0
        %v254 = vrot.slane %v253, 4
        %v255 = vadd.f32 %v253, %v254
        %v256 = vrot.slane %v255, 2
        %v257 = vadd.f32 %v255, %v256
        %v258 = vrot.slane %v257, 1
        %v259 = vadd.f32 %v257, %v258
        %v260 = vsel %vm228, %v251, 0.0
        %v261 = vrot.slane %v260, 4
        %v262 = vadd.f32 %v260, %v261
        %v263 = vrot.slane %v262, 2
        %v264 = vadd.f32 %v262, %v263
        %v265 = vrot.slane %v264, 1
        %v266 = vadd.f32 %v264, %v265
        %v267 = vlog2.pop %v259
        %v268 = vmul.f32 %v267, 0.6931472
        %v269 = vlog2.pop %v266
        %v270 = vmul.f32 %v269, 0.6931472
        %v271 = vadd.f32 %v268, %v235
        %v272 = vadd.f32 %v270, %v242
        %v273 = vlaneseq
        %v274 = vshrl.u32 %v273, 7
        %v275 = vlaneseq
        %v276 = vshrl.u32 %v275, 7
        %v277 = vsub.s32 0, %v276
        %v278 = vrot.slane %v224, %v277
        %v279 = vlaneseq
        %v280 = vshrl.u32 %v279, 7
        %v281 = vsub.s32 1, %v280
        %v282 = vrot.slane %v224, %v281
        %vm283 = vcmp.eq.s32.totalorder %v274, %v278
        %vm284 = vcmp.eq.s32.totalorder %v274, %v282
        %v285 = vsel %vm283, %v223, 0.0
        %v286 = vsel %vm284, %v226, 0.0
        %v287 = vsel %vm228, %v285, 0.0
        %v288 = vrot.slane %v287, 4
        %v289 = vadd.f32 %v287, %v288
        %v290 = vrot.slane %v289, 2
        %v291 = vadd.f32 %v289, %v290
        %v292 = vrot.slane %v291, 1
        %v293 = vadd.f32 %v291, %v292
        %v294 = vsel %vm228, %v286, 0.0
        %v295 = vrot.slane %v294, 4
        %v296 = vadd.f32 %v294, %v295
        %v297 = vrot.slane %v296, 2
        %v298 = vadd.f32 %v296, %v297
        %v299 = vrot.slane %v298, 1
        %v300 = vadd.f32 %v298, %v299
        %v301 = vlaneseq
        %v302 = vand.u32 %v301, 127
        %v303 = vadd.s32 %v302, 128
        %s304 = smul.u32 %s27, 256
        %v305 = vstv %s304
        %v306 = vadd.s32 %v302, %v305
        %v307 = vadd.s32 %v303, %v305
        %vm308 = vcmp.ne.s32.totalorder %v224, 255
        %vm309 = vcmp.lt.s32.totalorder %v306, 256
        %vm310 = vcmp.lt.s32.totalorder %v307, 256
        %v311 = vsel %vm309, 1, 0
        %v312 = vsel %vm310, 1, 0
        %v313 = vcombine.low %v311, %v312
        %v315 = vunpack.c.l.s4 1966171168
        %v316 = vunpack.c.0.s8 %v315
        %v317 = vlaneseq
        %v318 = vshrl.u32 %v317, 7
        %v319 = vsub.s32 %v316, %v318
        %v320 = vrot.slane %v313, %v319
        %v322 = vunpack.c.l.s4 1966171168
        %v323 = vunpack.c.0.s8 %v322
        %v324 = vlaneseq
        %v325 = vshrl.u32 %v324, 7
        %v326 = vsub.s32 %v323, %v325
        %v327 = vrot.slane %v320, %v326
        %vm328 = vcmp.ne.s32.totalorder %v327, 0
        %vm329 = vmand %vm308, %vm328
        %v330 = vsub.f32 %v271, %v293
        %v331 = vsub.f32 %v272, %v300
        %v334 = vcombine.low %v330, %v331
        %v336 = vunpack.c.l.s4 1966171168
        %v337 = vunpack.c.0.s8 %v336
        %v338 = vlaneseq
        %v339 = vshrl.u32 %v338, 7
        %v340 = vsub.s32 %v337, %v339
        %v341 = vrot.slane %v334, %v340
        %v343 = vunpack.c.l.s4 1966171168
        %v344 = vunpack.c.0.s8 %v343
        %v345 = vlaneseq
        %v346 = vshrl.u32 %v345, 7
        %v347 = vsub.s32 %v344, %v346
        %v348 = vrot.slane %v341, %v347
        %v350 = vsel %vm329, %v348, 0.0
        %v351 = vlaneseq
        %vm352 = vcmp.ge.s32.totalorder %v351, 0
        %vm353 = vcmp.lt.s32.totalorder %v351, 256
        %vm354 = vmand %vm352, %vm353
        %355 = vst.msk [vmem:[%s219] sm:$0x3] %vm354, %v350
        %s356 = sand.u32 %s100, 1
        %s357 = scalar_lea.sflag [#allocation4], %s356
        %s358 = sand.u32 %s100, 1
        %s359 = smul.addr %s358, 2
        %s360 = scalar_lea.vmem [#allocation7], %s359
        // Predicated region
        $region37: #{tpu_custom_call.1} parent=27 // pred_check
          %p361 = pneg %p110
        $region38: #{tpu_custom_call.1} parent=27 // pred_check_branch
          %363 = sbr.rel (%p361) target = $region40
        $region39: #{tpu_custom_call.1} parent=27 // pred_region
          %s364 = smul.u32 2, %s27
          %s366 = ssub.s32 32, 32
          %367 = vsyncadd %s357, %s366
          %s368 = smul.addr %s26, 2
          %s369 = sadd.s32 %s364, %s368
          %s370 = smul.addr %s369, 16
          %s371 = scalar_lea.hbm %s2, %s370
          %s373 = sshll.u32 %s360, 4
          %s374 = int_to_ptr.vmem [resolvable:$true] %s373
          %376 = dma.vmem_to_hbm [thread:$0]  %s374, 32, %s371, %s357
        $region40: #{tpu_custom_call.1} parent=27 // pred_fallthru
          _
      $region28: #{tpu_custom_call.1} parent=5 // pred_fallthru
        _
      %p377 = scmp.le.s32.totalorder 2, %s17
      // Predicated region
      $region41: #{tpu_custom_call.1} parent=5 // pred_check
        %p378 = pneg %p377
      $region42: #{tpu_custom_call.1} parent=5 // pred_check_branch
        %380 = sbr.rel (%p378) target = $region44
      $region43: #{tpu_custom_call.1} parent=5 // pred_region
        %s381 = ssub.s32 %s17, 2
        // Predicated region
        $region45: #{tpu_custom_call.1} parent=43 // pred_check
          %p382 = pneg %p116
        $region46: #{tpu_custom_call.1} parent=43 // pred_check_branch
          %384 = sbr.rel (%p382) target = $region48
        $region47: #{tpu_custom_call.1} parent=43 // pred_region
          %s385 = sand.u32 %s101, 1
          %s386 = scalar_lea.sflag [#allocation4], %s385
          %s387 = sand.u32 %s101, 1
          %s388 = smul.addr %s387, 2
          %s389 = scalar_lea.vmem [#allocation7], %s388
          %390 = dma.done %s386, 32
        $region48: #{tpu_custom_call.1} parent=43 // pred_fallthru
          _
      $region44: #{tpu_custom_call.1} parent=5 // pred_fallthru
        _
    $region6: #{tpu_custom_call.1} parent=1 // loop_footer
      %s21 = sadd.s32 1, %s17
    $region7: #{tpu_custom_call.1} parent=1 // loop_footer_branch
      %16 = sbr.rel target = $region3
    $region8: #{tpu_custom_call.1} parent=1 // loop_exit
      _
    %391 = vsyncpa [#allocation3], 1
    %s392 = scalar_lea.sflag [#allocation3], 1
    %393 = vsyncpa %s392, 1
    %394 = vsyncpa [#allocation6], 1
    %s395 = scalar_lea.sflag [#allocation6], 1
    %396 = vsyncpa %s395, 1
    %397 = vsyncpa [#allocation4], 1
    %s398 = scalar_lea.sflag [#allocation4], 1
    %399 = vsyncpa %s398, 1

</llo_original>
